<compile_context>
chip_gen: v5e
topology: v5e:2x2
jax: 0.10.0
libtpu: 0.0.40
codegen_flags: <defaults>
</compile_context>

<pallas_src>
import functools

import jax
import jax.numpy as jnp
import numpy as np
from jax.experimental import pallas as pl
from jax.experimental.pallas import tpu as pltpu


def _transition_kernel(x_ref, w_ref, scale_ref, shift_ref, o_ref, *,
                       block_h, W, Cin, Cout, matmul_dtype):
    # x_ref:     (1, block_h, W, Cin)   row-tile of one batch element (NHWC)
    # w_ref:     (Cin, Cout)            1x1 conv weight, (in, out) layout,
    #                                   pre-scaled by 0.25 (pool average)
    # scale_ref: (1, Cin)               folded BN scale = gamma / sqrt(var + eps)
    # shift_ref: (1, Cin)               folded BN shift = beta - mean * scale
    # o_ref:     (1, block_h//2, W//2, Cout)
    x = x_ref[0]                                   # (block_h, W, Cin)
    scale = scale_ref[0]                           # (Cin,)
    shift = shift_ref[0]                           # (Cin,)

    # BatchNorm (folded affine) + ReLU  -- pure VPU, one fused multiply-add.
    y = jnp.maximum(x * scale + shift, 0.0)

    # 2x2 pool (sum; the 1/4 is folded into w) BEFORE the matmul.
    # H direction: pair-add adjacent rows (leading-dim regroup, no relayout).
    yr = y.reshape(block_h // 2, 2, W, Cin)
    yh = yr[:, 0] + yr[:, 1]                       # (block_h//2, W, Cin)
    # W direction: pair-add adjacent columns (single sublane-stride step).
    yw = yh.reshape(block_h // 2, W // 2, 2, Cin)
    yp = yw[:, :, 0, :] + yw[:, :, 1, :]           # (block_h//2, W//2, Cin)

    # 1x1 conv == matmul over the channel dim (MXU), on the pooled tensor.
    m = (block_h // 2) * (W // 2)
    lhs = yp.reshape(m, Cin)
    rhs = w_ref[...]
    if matmul_dtype is not None:                   # optional bf16 MXU path
        lhs = lhs.astype(matmul_dtype)
        rhs = rhs.astype(matmul_dtype)
    out = jnp.dot(lhs, rhs, preferred_element_type=jnp.float32)   # (m, Cout)

    o_ref[0] = out.reshape(block_h // 2, W // 2, Cout).astype(o_ref.dtype)


def _pick_block_h(H, W, Cin, Cout, itemsize=4, budget_bytes=8 << 20):
    """Largest even divisor of H whose double-buffered in/out tiles stay well
    under the default scoped-VMEM limit on all generations (v5e/v6e/v7x)."""
    best = 2
    for th in range(2, H + 1, 2):
        if H % th:
            continue
        in_tile = th * W * Cin * itemsize
        out_tile = (th // 2) * (W // 2) * Cout * itemsize
        if 2 * (in_tile + out_tile) <= budget_bytes:
            best = th
    return best


def transition_layer_nhwc(x_nhwc, conv_w, gamma, beta, eps=1e-5,
                          block_h=None, matmul_dtype=None):
    """BN(train) -> ReLU -> 1x1 conv (no bias) -> AvgPool2d(2), NHWC layout.

    x_nhwc : (N, H, W, Cin)
    conv_w : (Cout, Cin, 1, 1)  PyTorch Conv2d weight layout
    returns: (N, H//2, W//2, Cout)
    """
    N, H, W, Cin = x_nhwc.shape
    Cout = conv_w.shape[0]
    assert H % 2 == 0 and W % 2 == 0, "AvgPool2d(2) tiling assumes even H, W"

    if block_h is None:
        block_h = _pick_block_h(H, W, Cin, Cout, x_nhwc.dtype.itemsize)
    assert block_h % 2 == 0 and H % block_h == 0

    # BN batch statistics (training-mode default of nn.BatchNorm2d),
    # single pass: var = E[x^2] - E[x]^2 (biased, as F.batch_norm uses).
    x32 = x_nhwc.astype(jnp.float32)
    mean = jnp.mean(x32, axis=(0, 1, 2))
    mean_sq = jnp.mean(x32 * x32, axis=(0, 1, 2))
    var = mean_sq - mean * mean
    inv = gamma / jnp.sqrt(var + eps)
    scale = inv.astype(x_nhwc.dtype)
    shift = (beta - mean * inv).astype(x_nhwc.dtype)
    # (Cout, Cin) -> (Cin, Cout); fold the 2x2-pool average (1/4) into w.
    w = jnp.transpose(conv_w[:, :, 0, 0], (1, 0)) * jnp.float32(0.25)
    w = w.astype(x_nhwc.dtype)

    kernel = functools.partial(
        _transition_kernel, block_h=block_h, W=W, Cin=Cin, Cout=Cout,
        matmul_dtype=matmul_dtype)

    out_elems = N * (H // 2) * (W // 2) * Cout
    cost = pl.CostEstimate(
        flops=2 * out_elems * Cin,                 # matmul FLOPs after the pool
        transcendentals=0,
        bytes_accessed=(x_nhwc.size + w.size + 2 * Cin + out_elems) * 4,
    )

    out_nhwc = pl.pallas_call(
        kernel,
        out_shape=jax.ShapeDtypeStruct((N, H // 2, W // 2, Cout), x_nhwc.dtype),
        grid_spec=pltpu.PrefetchScalarGridSpec(
            num_scalar_prefetch=0,
            grid=(N, H // block_h),
            in_specs=[
                pl.BlockSpec((1, block_h, W, Cin), lambda n, h: (n, h, 0, 0)),
                pl.BlockSpec((Cin, Cout), lambda n, h: (0, 0)),
                pl.BlockSpec((1, Cin), lambda n, h: (0, 0)),
                pl.BlockSpec((1, Cin), lambda n, h: (0, 0)),
            ],
            out_specs=pl.BlockSpec((1, block_h // 2, W // 2, Cout),
                                   lambda n, h: (n, h, 0, 0)),
        ),
        compiler_params=pltpu.CompilerParams(
            dimension_semantics=("parallel", "parallel")),
        cost_estimate=cost,
    )(x_nhwc, w, scale.reshape(1, Cin), shift.reshape(1, Cin))
    return out_nhwc


def transition_layer(x_nchw, conv_w, gamma, beta, eps=1e-5,
                     block_h=None, matmul_dtype=None):
    """PyTorch-compatible NCHW interface (matches TransitionLayer.forward)."""
    # TODO(synk): keep the surrounding model NHWC end-to-end and call
    # transition_layer_nhwc directly; these two transposes are full HBM round
    # trips that exist only to match the PyTorch NCHW interface.
    x = jnp.transpose(x_nchw, (0, 2, 3, 1))                  # NHWC
    out = transition_layer_nhwc(x, conv_w, gamma, beta, eps,
                                block_h=block_h, matmul_dtype=matmul_dtype)
    return jnp.transpose(out, (0, 3, 1, 2))                  # back to NCHW


def _reference(x_nchw, conv_w, gamma, beta, eps=1e-5):
    # pure-JAX reference mirroring the PyTorch forward (training-mode BN)
    mean = jnp.mean(x_nchw, axis=(0, 2, 3), keepdims=True)
    var = jnp.mean((x_nchw - mean) ** 2, axis=(0, 2, 3), keepdims=True)
    xn = (x_nchw - mean) / jnp.sqrt(var + eps)
    xn = xn * gamma[None, :, None, None] + beta[None, :, None, None]
    xr = jnp.maximum(xn, 0.0)
    y = jnp.einsum("nchw,oc->nohw", xr, conv_w[:, :, 0, 0])  # 1x1 conv
    N, C, H, W = y.shape
    return y.reshape(N, C, H // 2, 2, W // 2, 2).mean(axis=(3, 5))


if __name__ == "__main__":
    key = jax.random.PRNGKey(0)
    k1, k2, k3, k4 = jax.random.split(key, 4)

    N, Cin, H, W = 2, 4, 16, 16
    Cout = 8

    x = jax.random.normal(k1, (N, Cin, H, W), dtype=jnp.float32)
    conv_w = jax.random.normal(k2, (Cout, Cin, 1, 1), dtype=jnp.float32) * 0.1
    gamma = 1.0 + 0.1 * jax.random.normal(k3, (Cin,), dtype=jnp.float32)
    beta = 0.1 * jax.random.normal(k4, (Cin,), dtype=jnp.float32)

    # block_h=8 exercises the spatial tiling path (grid = (2, 2)).
    out = transition_layer(x, conv_w, gamma, beta, block_h=8)
    out = jax.block_until_ready(out)

    ref = jax.block_until_ready(_reference(x, conv_w, gamma, beta))
    np.testing.assert_allclose(np.asarray(out), np.asarray(ref),
                               rtol=1e-4, atol=1e-5)

    print("KERNEL_OK")
</pallas_src>

<mosaic_0001>
module attributes {stable_mosaic.version = 11 : i64} {
  func.func @_transition_kernel(%arg0: i32, %arg1: i32, %arg2: memref<1x8x16x4xf32, #tpu.memory_space<vmem>>, %arg3: memref<4x8xf32, #tpu.memory_space<vmem>>, %arg4: memref<1x4xf32, #tpu.memory_space<vmem>>, %arg5: memref<1x4xf32, #tpu.memory_space<vmem>>, %arg6: memref<1x4x8x8xf32, #tpu.memory_space<vmem>>) attributes {dimension_semantics = [#tpu.dimension_semantics<parallel>, #tpu.dimension_semantics<parallel>], iteration_bounds = array<i64: 2, 2>, scalar_prefetch = 0 : i64, scratch_operands = 0 : i64, tpu.core_type = #tpu.core_type<tc>, window_params = [{transform_indices = @transform_0, window_bounds = array<i64: 1, 8, 16, 4>}, {pipeline_mode = #tpu.pipeline_mode<synchronous>, transform_indices = @transform_1, window_bounds = array<i64: 4, 8>}, {pipeline_mode = #tpu.pipeline_mode<synchronous>, transform_indices = @transform_2, window_bounds = array<i64: 1, 4>}, {pipeline_mode = #tpu.pipeline_mode<synchronous>, transform_indices = @transform_3, window_bounds = array<i64: 1, 4>}, {transform_indices = @transform_4, window_bounds = array<i64: 1, 4, 8, 8>}]} {
    %c0 = arith.constant 0 : index
    %c0_0 = arith.constant 0 : index
    %c0_1 = arith.constant 0 : index
    %c0_2 = arith.constant 0 : index
    %0 = vector.load %arg2[%c0, %c0_0, %c0_1, %c0_2] : memref<1x8x16x4xf32, #tpu.memory_space<vmem>>, vector<1x8x16x4xf32>
    %1 = vector.shape_cast %0 : vector<1x8x16x4xf32> to vector<8x16x4xf32>
    %c0_3 = arith.constant 0 : index
    %c0_4 = arith.constant 0 : index
    %2 = vector.load %arg4[%c0_3, %c0_4] : memref<1x4xf32, #tpu.memory_space<vmem>>, vector<1x4xf32>
    %3 = vector.shape_cast %2 : vector<1x4xf32> to vector<4xf32>
    %c0_5 = arith.constant 0 : index
    %c0_6 = arith.constant 0 : index
    %4 = vector.load %arg5[%c0_5, %c0_6] : memref<1x4xf32, #tpu.memory_space<vmem>>, vector<1x4xf32>
    %5 = vector.shape_cast %4 : vector<1x4xf32> to vector<4xf32>
    %6 = vector.shape_cast %3 : vector<4xf32> to vector<1x1x4xf32>
    %7 = vector.broadcast %6 : vector<1x1x4xf32> to vector<8x16x4xf32>
    %8 = arith.mulf %1, %7 : vector<8x16x4xf32>
    %9 = vector.shape_cast %5 : vector<4xf32> to vector<1x1x4xf32>
    %10 = vector.broadcast %9 : vector<1x1x4xf32> to vector<8x16x4xf32>
    %11 = arith.addf %8, %10 : vector<8x16x4xf32>
    %cst = arith.constant 0.000000e+00 : f32
    %12 = vector.broadcast %cst : f32 to vector<8x16x4xf32>
    %13 = arith.maximumf %11, %12 : vector<8x16x4xf32>
    %14 = vector.shape_cast %13 : vector<8x16x4xf32> to vector<4x2x16x4xf32>
    %15 = vector.extract_strided_slice %14 {offsets = [0, 0, 0, 0], sizes = [4, 1, 16, 4], strides = [1, 1, 1, 1]} : vector<4x2x16x4xf32> to vector<4x1x16x4xf32>
    %16 = vector.shape_cast %15 : vector<4x1x16x4xf32> to vector<4x16x4xf32>
    %17 = vector.extract_strided_slice %14 {offsets = [0, 1, 0, 0], sizes = [4, 1, 16, 4], strides = [1, 1, 1, 1]} : vector<4x2x16x4xf32> to vector<4x1x16x4xf32>
    %18 = vector.shape_cast %17 : vector<4x1x16x4xf32> to vector<4x16x4xf32>
    %19 = arith.addf %16, %18 : vector<4x16x4xf32>
    %20 = vector.shape_cast %19 : vector<4x16x4xf32> to vector<4x8x2x4xf32>
    %21 = vector.extract_strided_slice %20 {offsets = [0, 0, 0, 0], sizes = [4, 8, 1, 4], strides = [1, 1, 1, 1]} : vector<4x8x2x4xf32> to vector<4x8x1x4xf32>
    %22 = vector.shape_cast %21 : vector<4x8x1x4xf32> to vector<4x8x4xf32>
    %23 = vector.extract_strided_slice %20 {offsets = [0, 0, 1, 0], sizes = [4, 8, 1, 4], strides = [1, 1, 1, 1]} : vector<4x8x2x4xf32> to vector<4x8x1x4xf32>
    %24 = vector.shape_cast %23 : vector<4x8x1x4xf32> to vector<4x8x4xf32>
    %25 = arith.addf %22, %24 : vector<4x8x4xf32>
    %26 = vector.shape_cast %25 : vector<4x8x4xf32> to vector<32x4xf32>
    %c0_7 = arith.constant 0 : index
    %c0_8 = arith.constant 0 : index
    %27 = vector.load %arg3[%c0_7, %c0_8] : memref<4x8xf32, #tpu.memory_space<vmem>>, vector<4x8xf32>
    %cst_9 = arith.constant dense<0.000000e+00> : vector<32x8xf32>
    %28 = tpu.matmul %26, %27, %cst_9 {dimension_numbers = #tpu.dot_dimension_numbers<[1], [0], [0], [1], [0, 0, 1, 1], [], []>} : vector<32x4xf32>, vector<4x8xf32>, vector<32x8xf32> -> vector<32x8xf32>
    %29 = vector.shape_cast %28 : vector<32x8xf32> to vector<4x8x8xf32>
    %c0_10 = arith.constant 0 : index
    %c0_11 = arith.constant 0 : index
    %c0_12 = arith.constant 0 : index
    %c0_13 = arith.constant 0 : index
    %30 = vector.load %arg6[%c0_10, %c0_11, %c0_12, %c0_13] : memref<1x4x8x8xf32, #tpu.memory_space<vmem>>, vector<1x4x8x8xf32>
    %31 = vector.shape_cast %30 : vector<1x4x8x8xf32> to vector<4x8x8xf32>
    %32 = vector.shape_cast %29 : vector<4x8x8xf32> to vector<1x4x8x8xf32>
    tpu.vector_store %arg6[%c0_10, %c0_11, %c0_12, %c0_13], %32 {strides = array<i32>} : memref<1x4x8x8xf32, #tpu.memory_space<vmem>>, vector<1x4x8x8xf32>,
    return
  }
  func.func @transform_0(%arg0: i32, %arg1: i32) -> (i32, i32, i32, i32) {
    %c0_i32 = arith.constant 0 : i32
    %c0_i32_0 = arith.constant 0 : i32
    %c0_i32_1 = arith.constant 0 : i32
    return %arg0, %arg1, %c0_i32, %c0_i32_0 : i32, i32, i32, i32
  }
  func.func @transform_1(%arg0: i32, %arg1: i32) -> (i32, i32) {
    %c0_i32 = arith.constant 0 : i32
    %c0_i32_0 = arith.constant 0 : i32
    %c0_i32_1 = arith.constant 0 : i32
    return %c0_i32, %c0_i32_0 : i32, i32
  }
  func.func @transform_2(%arg0: i32, %arg1: i32) -> (i32, i32) {
    %c0_i32 = arith.constant 0 : i32
    %c0_i32_0 = arith.constant 0 : i32
    %c0_i32_1 = arith.constant 0 : i32
    return %c0_i32, %c0_i32_0 : i32, i32
  }
  func.func @transform_3(%arg0: i32, %arg1: i32) -> (i32, i32) {
    %c0_i32 = arith.constant 0 : i32
    %c0_i32_0 = arith.constant 0 : i32
    %c0_i32_1 = arith.constant 0 : i32
    return %c0_i32, %c0_i32_0 : i32, i32
  }
  func.func @transform_4(%arg0: i32, %arg1: i32) -> (i32, i32, i32, i32) {
    %c0_i32 = arith.constant 0 : i32
    %c0_i32_0 = arith.constant 0 : i32
    %c0_i32_1 = arith.constant 0 : i32
    return %arg0, %arg1, %c0_i32, %c0_i32_0 : i32, i32, i32, i32
  }
}

</mosaic_0001>

<llo_original>
// kernel: tpu_custom_call.1
$region0: #{tpu_custom_call.1}
  #allocation0 [shape = 'u32[]', space=smem, size = 0x4, offset = 0x4, fixed_abs, tag = 'smem constant byte address 0x4 - core index']
  #allocation1 [shape = 'u32[72,128]{1,0:T(1,128)}', space=vmem, size = 0x9000, scoped, tag = 'internal scratch']
  %s0 = inlined_call_operand.vmem [shape: f32[2,16,16,4], index: 0, kind: input, shape index: {}]
  %s1 = inlined_call_operand.vmem [shape: f32[4,8], index: 1, kind: input, shape index: {}]
  %s2 = inlined_call_operand.vmem [shape: f32[1,4], index: 2, kind: input, shape index: {}]
  %s3 = inlined_call_operand.vmem [shape: f32[1,4], index: 3, kind: input, shape index: {}]
  %s4 = inlined_call_operand.hbm [shape: f32[2,8,8,8], index: 4, kind: output, shape index: {}]
  %s5 = sld [smem:[#allocation0]]
  $region49: #{tpu_custom_call.1} parent=0
    _
  %s7 = ssub.s32 1, %s5
  %s8 = scalar_select 0, %s7, %s5
  $region1: #{tpu_custom_call.1} parent=0
    #allocation2 [shape = 'u8[32768]{0}', space=vmem, size = 0x8000, scoped, tag = 'output window, operand 0']
    #allocation3 [shape = 's32[2]{0}', space=sflag, size = 0x8, scoped, tag = 'scoped memory for tpu_custom_call.1']
    %9 = vsyncpa [#allocation3], 0
    %s10 = scalar_lea.sflag [#allocation3], 1
    %11 = vsyncpa %s10, 0
    loop: start=0, step=1, limit=6
    $region2: #{tpu_custom_call.1} parent=1 // loop_pre_header
      _
    $region3: #{tpu_custom_call.1} parent=1 // loop_header
      %s13 = sphi 0, %s17
      %p14 = scmp.ge.s32.totalorder %s13, 6
      %s20 = sphi 0, %s32
      %s21 = sphi 0, %s28
      %s22 = sphi 0, %s20
      %s23 = sphi 0, %s21
      %s24 = sphi 0, %s22
      %s25 = sphi 0, %s23
      %s37 = sphi 0, %s39
      %s40 = sphi 0, %s37
      %s41 = sphi 0, %s40
      %s57 = sphi 0, %s41
      %s61 = sphi 0, %s61
      %s63 = sphi 0, %s61
      %s64 = sphi 0, %s63
      %s78 = sphi 0, %s64
      %s82 = sphi 0, %s82
      %s84 = sphi 0, %s82
      %s85 = sphi 0, %s84
      %s99 = sphi 0, %s85
      %s103 = sphi 0, %s103
      %s105 = sphi 0, %s103
      %s106 = sphi 0, %s105
      %s120 = sphi 0, %s106
      %s128 = sphi 0, %s130
      %s131 = sphi 0, %s128
      %s132 = sphi 0, %s131
      %s148 = sphi 0, %s132
    $region4: #{tpu_custom_call.1} parent=1 // loop_header_branch
      %16 = sbr.rel (%p14) target = $region8
    $region5: #{tpu_custom_call.1} parent=1 // loop_body
      %s18 = ssub.s32 %s13, 1
      %s19 = ssub.s32 %s13, 2
      %s26 = sadd.s32 1, %s21
      %p27 = scmp.ge.s32.totalorder %s26, 2
      %s28 = scalar_select %p27, 0, %s26
      %s29 = sadd.s32 1, %s20
      %s30 = scalar_select %p27, %s29, %s20
      %p31 = scmp.ge.s32.totalorder %s30, 2
      %s32 = scalar_select %p31, 0, %s30
      %s33 = ssub.s32 %s20, %s32
      %s34 = ssub.s32 %s21, %s28
      %s35 = sor.u32 %s33, %s34
      %p36 = scmp.eq.s32.totalorder %s35, 0
      %s38 = sadd.s32 %s37, 1
      %s39 = scalar_select %p36, %s37, %s38
      %p42 = pneg %p36
      %p43 = scmp.eq.s32.totalorder %s13, 3
      %p44 = por %p42, %p43
      %p45 = scmp.ne.s32.totalorder %s37, %s40
      %p46 = scmp.eq.s32.totalorder %s13, 0
      %p47 = por %p45, %p46
      %p48 = scmp.ne.s32.totalorder %s37, %s40
      %p49 = scmp.eq.s32.totalorder %s18, 3
      %p50 = por %p48, %p49
      %p51 = scmp.ne.s32.totalorder %s40, %s41
      %p52 = scmp.eq.s32.totalorder %s18, 0
      %p53 = por %p51, %p52
      %p54 = scmp.ne.s32.totalorder %s40, %s41
      %p55 = scmp.eq.s32.totalorder %s19, 3
      %p56 = por %p54, %p55
      %p58 = scmp.ne.s32.totalorder %s41, %s57
      %p59 = scmp.eq.s32.totalorder %s19, 0
      %p60 = por %p58, %p59
      %s62 = sadd.s32 %s61, 1
      %p65 = scmp.eq.s32.totalorder %s13, 3
      %p66 = scmp.ne.s32.totalorder %s61, %s63
      %p67 = scmp.eq.s32.totalorder %s13, 0
      %p68 = por %p66, %p67
      %p69 = scmp.ne.s32.totalorder %s61, %s63
      %p70 = scmp.eq.s32.totalorder %s18, 3
      %p71 = por %p69, %p70
      %p72 = scmp.ne.s32.totalorder %s63, %s64
      %p73 = scmp.eq.s32.totalorder %s18, 0
      %p74 = por %p72, %p73
      %p75 = scmp.ne.s32.totalorder %s63, %s64
      %p76 = scmp.eq.s32.totalorder %s19, 3
      %p77 = por %p75, %p76
      %p79 = scmp.ne.s32.totalorder %s64, %s78
      %p80 = scmp.eq.s32.totalorder %s19, 0
      %p81 = por %p79, %p80
      %s83 = sadd.s32 %s82, 1
      %p86 = scmp.eq.s32.totalorder %s13, 3
      %p87 = scmp.ne.s32.totalorder %s82, %s84
      %p88 = scmp.eq.s32.totalorder %s13, 0
      %p89 = por %p87, %p88
      %p90 = scmp.ne.s32.totalorder %s82, %s84
      %p91 = scmp.eq.s32.totalorder %s18, 3
      %p92 = por %p90, %p91
      %p93 = scmp.ne.s32.totalorder %s84, %s85
      %p94 = scmp.eq.s32.totalorder %s18, 0
      %p95 = por %p93, %p94
      %p96 = scmp.ne.s32.totalorder %s84, %s85
      %p97 = scmp.eq.s32.totalorder %s19, 3
      %p98 = por %p96, %p97
      %p100 = scmp.ne.s32.totalorder %s85, %s99
      %p101 = scmp.eq.s32.totalorder %s19, 0
      %p102 = por %p100, %p101
      %s104 = sadd.s32 %s103, 1
      %p107 = scmp.eq.s32.totalorder %s13, 3
      %p108 = scmp.ne.s32.totalorder %s103, %s105
      %p109 = scmp.eq.s32.totalorder %s13, 0
      %p110 = por %p108, %p109
      %p111 = scmp.ne.s32.totalorder %s103, %s105
      %p112 = scmp.eq.s32.totalorder %s18, 3
      %p113 = por %p111, %p112
      %p114 = scmp.ne.s32.totalorder %s105, %s106
      %p115 = scmp.eq.s32.totalorder %s18, 0
      %p116 = por %p114, %p115
      %p117 = scmp.ne.s32.totalorder %s105, %s106
      %p118 = scmp.eq.s32.totalorder %s19, 3
      %p119 = por %p117, %p118
      %p121 = scmp.ne.s32.totalorder %s106, %s120
      %p122 = scmp.eq.s32.totalorder %s19, 0
      %p123 = por %p121, %p122
      %s124 = ssub.s32 %s20, %s32
      %s125 = ssub.s32 %s21, %s28
      %s126 = sor.u32 %s124, %s125
      %p127 = scmp.eq.s32.totalorder %s126, 0
      %s129 = sadd.s32 %s128, 1
      %s130 = scalar_select %p127, %s128, %s129
      %p133 = pneg %p127
      %p134 = scmp.eq.s32.totalorder %s13, 3
      %p135 = por %p133, %p134
      %p136 = scmp.ne.s32.totalorder %s128, %s131
      %p137 = scmp.eq.s32.totalorder %s13, 0
      %p138 = por %p136, %p137
      %p139 = scmp.ne.s32.totalorder %s128, %s131
      %p140 = scmp.eq.s32.totalorder %s18, 3
      %p141 = por %p139, %p140
      %p142 = scmp.ne.s32.totalorder %s131, %s132
      %p143 = scmp.eq.s32.totalorder %s18, 0
      %p144 = por %p142, %p143
      %p145 = scmp.ne.s32.totalorder %s131, %s132
      %p146 = scmp.eq.s32.totalorder %s19, 3
      %p147 = por %p145, %p146
      %p149 = scmp.ne.s32.totalorder %s132, %s148
      %p150 = scmp.eq.s32.totalorder %s19, 0
      %p151 = por %p149, %p150
      %p152 = scmp.le.s32.totalorder 1, %s13
      %p153 = scmp.lt.s32.totalorder %s13, 5
      %p154 = pnand %p152, %p153
      %p155 = pneg %p154
      // Predicated region
      $region9: #{tpu_custom_call.1} parent=5 // pred_check
        _
      $region10: #{tpu_custom_call.1} parent=5 // pred_check_branch
        %157 = sbr.rel (%p154) target = $region12
      $region11: #{tpu_custom_call.1} parent=5 // pred_region
        %s158 = ssub.s32 %s13, 1
        // Predicated region
        $region13: #{tpu_custom_call.1} parent=11 // pred_check
          %p159 = pneg %p74
        $region14: #{tpu_custom_call.1} parent=11 // pred_check_branch
          %161 = sbr.rel (%p159) target = $region16
        $region15: #{tpu_custom_call.1} parent=11 // pred_region
          _
        $region16: #{tpu_custom_call.1} parent=11 // pred_fallthru
          _
        // Predicated region
        $region17: #{tpu_custom_call.1} parent=11 // pred_check
          %p162 = pneg %p95
        $region18: #{tpu_custom_call.1} parent=11 // pred_check_branch
          %164 = sbr.rel (%p162) target = $region20
        $region19: #{tpu_custom_call.1} parent=11 // pred_region
          _
        $region20: #{tpu_custom_call.1} parent=11 // pred_fallthru
          _
        // Predicated region
        $region21: #{tpu_custom_call.1} parent=11 // pred_check
          %p165 = pneg %p116
        $region22: #{tpu_custom_call.1} parent=11 // pred_check_branch
          %167 = sbr.rel (%p165) target = $region24
        $region23: #{tpu_custom_call.1} parent=11 // pred_region
          _
        $region24: #{tpu_custom_call.1} parent=11 // pred_fallthru
          _
      $region12: #{tpu_custom_call.1} parent=5 // pred_fallthru
        _
      %p168 = scmp.lt.s32.totalorder %s13, 4
      // Predicated region
      $region25: #{tpu_custom_call.1} parent=5 // pred_check
        %p169 = pneg %p168
      $region26: #{tpu_custom_call.1} parent=5 // pred_check_branch
        %171 = sbr.rel (%p169) target = $region28
      $region27: #{tpu_custom_call.1} parent=5 // pred_region
        // Predicated region
        $region29: #{tpu_custom_call.1} parent=27 // pred_check
          %p172 = pneg %p47
        $region30: #{tpu_custom_call.1} parent=27 // pred_check_branch
          %174 = sbr.rel (%p172) target = $region32
        $region31: #{tpu_custom_call.1} parent=27 // pred_region
          %s175 = smul.u32 8, %s21
          %p176 = scmp.lt.s32.totalorder %s20, 1
          %s177 = scalar_select %p176, %s20, 1
          %p178 = scmp.lt.s32.totalorder %s175, 15
          %s179 = scalar_select %p178, %s175, 15
          %s180 = smul.addr %s179, 2
          %s181 = smul.addr %s177, 32
          %s182 = sadd.s32 %s180, %s181
          %s183 = smul.addr %s182, 8
          %s184 = scalar_lea.vmem %s0, %s183
          %s185 = smul.u32 8, %s21
        $region32: #{tpu_custom_call.1} parent=27 // pred_fallthru
          _
      $region28: #{tpu_custom_call.1} parent=5 // pred_fallthru
        _
      %p186 = scmp.le.s32.totalorder 1, %s13
      %p187 = scmp.lt.s32.totalorder %s13, 5
      %p188 = pnand %p186, %p187
      %p189 = pneg %p188
      // Predicated region
      $region33: #{tpu_custom_call.1} parent=5 // pred_check
        _
      $region34: #{tpu_custom_call.1} parent=5 // pred_check_branch
        %191 = sbr.rel (%p188) target = $region36
      $region35: #{tpu_custom_call.1} parent=5 // pred_region
        %s192 = ssub.s32 %s13, 1
        %s193 = smul.u32 8, %s23
        %p194 = scmp.lt.s32.totalorder %s22, 1
        %s195 = scalar_select %p194, %s22, 1
        %p196 = scmp.lt.s32.totalorder %s193, 15
        %s197 = scalar_select %p196, %s193, 15
        %s198 = smul.addr %s197, 2
        %s199 = smul.addr %s195, 32
        %s200 = sadd.s32 %s198, %s199
        %s201 = smul.addr %s200, 8
        %s202 = scalar_lea.vmem %s0, %s201
        %p203 = pneg %p53
        %p204 = pneg %p50
        %p205 = pneg %p74
        %p206 = pneg %p71
        %p207 = pneg %p95
        %p208 = pneg %p92
        %p209 = pneg %p116
        %p210 = pneg %p113
        %p211 = pneg %p144
        %p212 = pneg %p141
        %s213 = sand.u32 %s131, 1
        %s214 = scalar_lea.sflag [#allocation3], %s213
        %s215 = sand.u32 %s131, 1
        %s216 = smul.addr %s215, 32
        %s217 = scalar_lea.vmem [#allocation2], %s216
        %s218 = smul.u32 8, %s23
        %p219 = scmp.lt.s32.totalorder %s22, 1
        %s220 = scalar_select %p219, %s22, 1
        %p221 = scmp.lt.s32.totalorder %s218, 15
        %s222 = scalar_select %p221, %s218, 15
        %s223 = smul.addr %s222, 2
        %s224 = smul.addr %s220, 32
        %s225 = sadd.s32 %s223, %s224
        %s226 = smul.addr %s225, 8
        %s227 = scalar_lea.vmem %s0, %s226
        %s228 = smul.u32 8, %s23
        %s229 = smul.u32 4, %s23
        %v230 = vld [vmem:[%s227] sm:$0xff]
        %v231 = vld [vmem:[%s227 + $0x8] sm:$0xff]
        %v232 = vld [vmem:[%s227 + $0x10] sm:$0xff]
        %v233 = vld [vmem:[%s227 + $0x18] sm:$0xff]
        %v234 = vld [vmem:[%s227 + $0x20] sm:$0xff]
        %v235 = vld [vmem:[%s227 + $0x28] sm:$0xff]
        %v236 = vld [vmem:[%s227 + $0x30] sm:$0xff]
        %v237 = vld [vmem:[%s227 + $0x38] sm:$0xff]
        %v238 = vld [vmem:[%s227 + $0x40] sm:$0xff]
        %v239 = vld [vmem:[%s227 + $0x48] sm:$0xff]
        %v240 = vld [vmem:[%s227 + $0x50] sm:$0xff]
        %v241 = vld [vmem:[%s227 + $0x58] sm:$0xff]
        %v242 = vld [vmem:[%s227 + $0x60] sm:$0xff]
        %v243 = vld [vmem:[%s227 + $0x68] sm:$0xff]
        %v244 = vld [vmem:[%s227 + $0x70] sm:$0xff]
        %v245 = vld [vmem:[%s227 + $0x78] sm:$0xff]
        %v246 = vld [vmem:[%s2] sm:$0x1]
        %v247 = vld [vmem:[%s3] sm:$0x1]
        %v249 = vperm.slane %v246, 0
        %v251 = vmul.f32 %v230, %v249
        %v252 = vmul.f32 %v231, %v249
        %v253 = vmul.f32 %v232, %v249
        %v254 = vmul.f32 %v233, %v249
        %v255 = vmul.f32 %v234, %v249
        %v256 = vmul.f32 %v235, %v249
        %v257 = vmul.f32 %v236, %v249
        %v258 = vmul.f32 %v237, %v249
        %v259 = vmul.f32 %v238, %v249
        %v260 = vmul.f32 %v239, %v249
        %v261 = vmul.f32 %v240, %v249
        %v262 = vmul.f32 %v241, %v249
        %v263 = vmul.f32 %v242, %v249
        %v264 = vmul.f32 %v243, %v249
        %v265 = vmul.f32 %v244, %v249
        %v266 = vmul.f32 %v245, %v249
        %v268 = vperm.slane %v247, 0
        %v270 = vadd.f32 %v251, %v268
        %v271 = vadd.f32 %v252, %v268
        %v272 = vadd.f32 %v253, %v268
        %v273 = vadd.f32 %v254, %v268
        %v274 = vadd.f32 %v255, %v268
        %v275 = vadd.f32 %v256, %v268
        %v276 = vadd.f32 %v257, %v268
        %v277 = vadd.f32 %v258, %v268
        %v278 = vadd.f32 %v259, %v268
        %v279 = vadd.f32 %v260, %v268
        %v280 = vadd.f32 %v261, %v268
        %v281 = vadd.f32 %v262, %v268
        %v282 = vadd.f32 %v263, %v268
        %v283 = vadd.f32 %v264, %v268
        %v284 = vadd.f32 %v265, %v268
        %v285 = vadd.f32 %v266, %v268
        %v286 = vmax.f32 %v270, 0.0
        %v287 = vmax.f32 %v271, 0.0
        %v288 = vmax.f32 %v272, 0.0
        %v289 = vmax.f32 %v273, 0.0
        %v290 = vmax.f32 %v274, 0.0
        %v291 = vmax.f32 %v275, 0.0
        %v292 = vmax.f32 %v276, 0.0
        %v293 = vmax.f32 %v277, 0.0
        %v294 = vmax.f32 %v278, 0.0
        %v295 = vmax.f32 %v279, 0.0
        %v296 = vmax.f32 %v280, 0.0
        %v297 = vmax.f32 %v281, 0.0
        %v298 = vmax.f32 %v282, 0.0
        %v299 = vmax.f32 %v283, 0.0
        %v300 = vmax.f32 %v284, 0.0
        %v301 = vmax.f32 %v285, 0.0
        %v302 = vadd.f32 %v286, %v288
        %v303 = vadd.f32 %v287, %v289
        %v304 = vadd.f32 %v290, %v292
        %v305 = vadd.f32 %v291, %v293
        %v306 = vadd.f32 %v294, %v296
        %v307 = vadd.f32 %v295, %v297
        %v308 = vadd.f32 %v298, %v300
        %v309 = vadd.f32 %v299, %v301
        %v318 = vrot.slane %v302, 2
        %v319 = vrot.slane %v302, 4
        %v320 = vrot.slane %v302, 6
        %v321 = vrot.slane %v303, 2
        %v322 = vrot.slane %v303, 4
        %v323 = vrot.slane %v303, 6
        %v324 = vrot.slane %v304, 2
        %v325 = vrot.slane %v304, 4
        %v326 = vrot.slane %v304, 6
        %v327 = vrot.slane %v305, 2
        %v328 = vrot.slane %v305, 4
        %v329 = vrot.slane %v305, 6
        %v330 = vrot.slane %v306, 2
        %v331 = vrot.slane %v306, 4
        %v332 = vrot.slane %v306, 6
        %v333 = vrot.slane %v307, 2
        %v334 = vrot.slane %v307, 4
        %v335 = vrot.slane %v307, 6
        %v336 = vrot.slane %v308, 2
        %v337 = vrot.slane %v308, 4
        %v338 = vrot.slane %v308, 6
        %v339 = vrot.slane %v309, 2
        %v340 = vrot.slane %v309, 4
        %v341 = vrot.slane %v309, 6
        %v366 = vrot.slane %v302, 7
        %v367 = vrot.slane %v366, 2
        %v368 = vrot.slane %v318, 7
        %v369 = vrot.slane %v368, 2
        %v370 = vrot.slane %v319, 7
        %v371 = vrot.slane %v370, 2
        %v372 = vrot.slane %v320, 7
        %v373 = vrot.slane %v372, 2
        %v374 = vrot.slane %v303, 7
        %v375 = vrot.slane %v374, 2
        %v376 = vrot.slane %v321, 7
        %v377 = vrot.slane %v376, 2
        %v378 = vrot.slane %v322, 7
        %v379 = vrot.slane %v378, 2
        %v380 = vrot.slane %v323, 7
        %v381 = vrot.slane %v380, 2
        %v382 = vrot.slane %v304, 7
        %v383 = vrot.slane %v382, 2
        %v384 = vrot.slane %v324, 7
        %v385 = vrot.slane %v384, 2
        %v386 = vrot.slane %v325, 7
        %v387 = vrot.slane %v386, 2
        %v388 = vrot.slane %v326, 7
        %v389 = vrot.slane %v388, 2
        %v390 = vrot.slane %v305, 7
        %v391 = vrot.slane %v390, 2
        %v392 = vrot.slane %v327, 7
        %v393 = vrot.slane %v392, 2
        %v394 = vrot.slane %v328, 7
        %v395 = vrot.slane %v394, 2
        %v396 = vrot.slane %v329, 7
        %v397 = vrot.slane %v396, 2
        %v398 = vrot.slane %v306, 7
        %v399 = vrot.slane %v398, 2
        %v400 = vrot.slane %v330, 7
        %v401 = vrot.slane %v400, 2
        %v402 = vrot.slane %v331, 7
        %v403 = vrot.slane %v402, 2
        %v404 = vrot.slane %v332, 7
        %v405 = vrot.slane %v404, 2
        %v406 = vrot.slane %v307, 7
        %v407 = vrot.slane %v406, 2
        %v408 = vrot.slane %v333, 7
        %v409 = vrot.slane %v408, 2
        %v410 = vrot.slane %v334, 7
        %v411 = vrot.slane %v410, 2
        %v412 = vrot.slane %v335, 7
        %v413 = vrot.slane %v412, 2
        %v414 = vrot.slane %v308, 7
        %v415 = vrot.slane %v414, 2
        %v416 = vrot.slane %v336, 7
        %v417 = vrot.slane %v416, 2
        %v418 = vrot.slane %v337, 7
        %v419 = vrot.slane %v418, 2
        %v420 = vrot.slane %v338, 7
        %v421 = vrot.slane %v420, 2
        %v422 = vrot.slane %v309, 7
        %v423 = vrot.slane %v422, 2
        %v424 = vrot.slane %v339, 7
        %v425 = vrot.slane %v424, 2
        %v426 = vrot.slane %v340, 7
        %v427 = vrot.slane %v426, 2
        %v428 = vrot.slane %v341, 7
        %v429 = vrot.slane %v428, 2
        %v462 = vadd.f32 %v302, %v367
        %v463 = vadd.f32 %v318, %v369
        %v464 = vadd.f32 %v319, %v371
        %v465 = vadd.f32 %v320, %v373
        %v466 = vadd.f32 %v303, %v375
        %v467 = vadd.f32 %v321, %v377
        %v468 = vadd.f32 %v322, %v379
        %v469 = vadd.f32 %v323, %v381
        %v470 = vadd.f32 %v304, %v383
        %v471 = vadd.f32 %v324, %v385
        %v472 = vadd.f32 %v325, %v387
        %v473 = vadd.f32 %v326, %v389
        %v474 = vadd.f32 %v305, %v391
        %v475 = vadd.f32 %v327, %v393
        %v476 = vadd.f32 %v328, %v395
        %v477 = vadd.f32 %v329, %v397
        %v478 = vadd.f32 %v306, %v399
        %v479 = vadd.f32 %v330, %v401
        %v480 = vadd.f32 %v331, %v403
        %v481 = vadd.f32 %v332, %v405
        %v482 = vadd.f32 %v307, %v407
        %v483 = vadd.f32 %v333, %v409
        %v484 = vadd.f32 %v334, %v411
        %v485 = vadd.f32 %v335, %v413
        %v486 = vadd.f32 %v308, %v415
        %v487 = vadd.f32 %v336, %v417
        %v488 = vadd.f32 %v337, %v419
        %v489 = vadd.f32 %v338, %v421
        %v490 = vadd.f32 %v309, %v423
        %v491 = vadd.f32 %v339, %v425
        %v492 = vadd.f32 %v340, %v427
        %v493 = vadd.f32 %v341, %v429
        %v494 = vld [vmem:[%s1] sm:$0xf]
        %v527 = vperm.slane %v462, 0
        %v528 = vperm.slane %v463, 0
        %v529 = vperm.slane %v464, 0
        %v530 = vperm.slane %v465, 0
        %v531 = vperm.slane %v466, 0
        %v532 = vperm.slane %v467, 0
        %v533 = vperm.slane %v468, 0
        %v534 = vperm.slane %v469, 0
        %v535 = vperm.slane %v470, 0
        %v536 = vperm.slane %v471, 0
        %v537 = vperm.slane %v472, 0
        %v538 = vperm.slane %v473, 0
        %v539 = vperm.slane %v474, 0
        %v540 = vperm.slane %v475, 0
        %v541 = vperm.slane %v476, 0
        %v542 = vperm.slane %v477, 0
        %v543 = vperm.slane %v478, 0
        %v544 = vperm.slane %v479, 0
        %v545 = vperm.slane %v480, 0
        %v546 = vperm.slane %v481, 0
        %v547 = vperm.slane %v482, 0
        %v548 = vperm.slane %v483, 0
        %v549 = vperm.slane %v484, 0
        %v550 = vperm.slane %v485, 0
        %v551 = vperm.slane %v486, 0
        %v552 = vperm.slane %v487, 0
        %v553 = vperm.slane %v488, 0
        %v554 = vperm.slane %v489, 0
        %v555 = vperm.slane %v490, 0
        %v556 = vperm.slane %v491, 0
        %v557 = vperm.slane %v492, 0
        %v558 = vperm.slane %v493, 0
        %vm559 = vcmask 1041409
        %v560 = vsel %vm559, %v528, %v527
        %vm561 = vcmask 1042434
        %v562 = vsel %vm561, %v529, %v560
        %vm563 = vcmask 1043459
        %v564 = vsel %vm563, %v530, %v562
        %vm565 = vcmask 1044484
        %v566 = vsel %vm565, %v531, %v564
        %vm567 = vcmask 1045509
        %v568 = vsel %vm567, %v532, %v566
        %vm569 = vcmask 1046534
        %v570 = vsel %vm569, %v533, %v568
        %vm571 = vcmask 1047559
        %v572 = vsel %vm571, %v534, %v570
        %v573 = vsel %vm559, %v536, %v535
        %v574 = vsel %vm561, %v537, %v573
        %v575 = vsel %vm563, %v538, %v574
        %v576 = vsel %vm565, %v539, %v575
        %v577 = vsel %vm567, %v540, %v576
        %v578 = vsel %vm569, %v541, %v577
        %v579 = vsel %vm571, %v542, %v578
        %v580 = vsel %vm559, %v544, %v543
        %v581 = vsel %vm561, %v545, %v580
        %v582 = vsel %vm563, %v546, %v581
        %v583 = vsel %vm565, %v547, %v582
        %v584 = vsel %vm567, %v548, %v583
        %v585 = vsel %vm569, %v549, %v584
        %v586 = vsel %vm571, %v550, %v585
        %v587 = vsel %vm559, %v552, %v551
        %v588 = vsel %vm561, %v553, %v587
        %v589 = vsel %vm563, %v554, %v588
        %v590 = vsel %vm565, %v555, %v589
        %v591 = vsel %vm567, %v556, %v590
        %v592 = vsel %vm569, %v557, %v591
        %v593 = vsel %vm571, %v558, %v592
        %vm594 = vcmask 31744
        %v595 = vsel %vm594, %v572, 0
        %v597 = vsel %vm594, %v579, 0
        %v599 = vsel %vm594, %v586, 0
        %v601 = vsel %vm594, %v593, 0
        %vm603 = vcmask 1043456
        %v605 = vsel %vm603, %v494, 0
        %607 = vmatpush.msra.mxu0 0.0
        %608 = vmatpush.msra.mxu0 0.0
        %609 = vmatpush.msra.mxu0 0.0
        %610 = vmatpush.msra.mxu0 0.0
        %611 = vmatpush.msra.mxu0 0.0
        %612 = vmatpush.msra.mxu0 0.0
        %613 = vmatpush.msra.mxu0 0.0
        %614 = vmatpush.msra.mxu0 0.0
        %615 = vmatpush.msra.mxu0 0.0
        %616 = vmatpush.msra.mxu0 0.0
        %617 = vmatpush.msra.mxu0 0.0
        %618 = vmatpush.msra.mxu0 0.0
        %619 = vmatpush.msra.mxu0 0.0
        %620 = vmatpush.msra.mxu0 0.0
        %621 = vmatpush.msra.mxu0 0.0
        %622 = vmatpush.msra.mxu0 %v605
        %623 = vmatmul.f32.gmra.mxu0 %v595
        %v624 = vpop.f32.mrf.mxu0
        %v625 = vadd.f32 0.0, %v624
        %626 = vmatmul.f32.gmra.mxu0 %v597
        %v627 = vpop.f32.mrf.mxu0
        %v628 = vadd.f32 0.0, %v627
        %629 = vmatmul.f32.gmra.mxu0 %v599
        %v630 = vpop.f32.mrf.mxu0
        %v631 = vadd.f32 0.0, %v630
        %632 = vmatmul.f32.gmra.mxu0 %v601
        %v633 = vpop.f32.mrf.mxu0
        %v634 = vadd.f32 0.0, %v633
        %635 = vdwg.mxu0
        %vm636 = vcmask 64512
        %637 = vst.msk [vmem:[%s217] sm:$0xff] %vm636, %v625
        %638 = vst.msk [vmem:[%s217 + $0x8] sm:$0xff] %vm636, %v628
        %639 = vst.msk [vmem:[%s217 + $0x10] sm:$0xff] %vm636, %v631
        %640 = vst.msk [vmem:[%s217 + $0x18] sm:$0xff] %vm636, %v634
        %s641 = sand.u32 %s131, 1
        %s642 = scalar_lea.sflag [#allocation3], %s641
        %s643 = sand.u32 %s131, 1
        %s644 = smul.addr %s643, 32
        %s645 = scalar_lea.vmem [#allocation2], %s644
        // Predicated region
        $region37: #{tpu_custom_call.1} parent=35 // pred_check
          %p646 = pneg %p141
        $region38: #{tpu_custom_call.1} parent=35 // pred_check_branch
          %648 = sbr.rel (%p646) target = $region40
        $region39: #{tpu_custom_call.1} parent=35 // pred_region
          %s649 = smul.u32 4, %s23
          %651 = vsyncadd %s642, 0
          %s652 = smul.addr %s22, 8
          %s653 = sadd.s32 %s649, %s652
          %s654 = smul.addr %s653, 8
          %s655 = scalar_lea.hbm %s4, %s654
          %s656 = sshll.u32 %s645, 4
          %s657 = int_to_ptr.vmem [resolvable:$true] %s656
          %s658 = sshll.u32 %s655, 4
          %s659 = int_to_ptr.hbm [resolvable:$true] %s658
          %664 = dma.vmem_to_hbm [thread:$0]  %s657, 512, %s659, %s642, 128, 128, 8
        $region40: #{tpu_custom_call.1} parent=35 // pred_fallthru
          _
      $region36: #{tpu_custom_call.1} parent=5 // pred_fallthru
        _
      %p665 = scmp.le.s32.totalorder 2, %s13
      // Predicated region
      $region41: #{tpu_custom_call.1} parent=5 // pred_check
        %p666 = pneg %p665
      $region42: #{tpu_custom_call.1} parent=5 // pred_check_branch
        %668 = sbr.rel (%p666) target = $region44
      $region43: #{tpu_custom_call.1} parent=5 // pred_region
        %s669 = ssub.s32 %s13, 2
        // Predicated region
        $region45: #{tpu_custom_call.1} parent=43 // pred_check
          %p670 = pneg %p147
        $region46: #{tpu_custom_call.1} parent=43 // pred_check_branch
          %672 = sbr.rel (%p670) target = $region48
        $region47: #{tpu_custom_call.1} parent=43 // pred_region
          %s673 = sand.u32 %s132, 1
          %s674 = scalar_lea.sflag [#allocation3], %s673
          %s675 = sand.u32 %s132, 1
          %s676 = smul.addr %s675, 32
          %s677 = scalar_lea.vmem [#allocation2], %s676
          %679 = dma.done %s674, 512
        $region48: #{tpu_custom_call.1} parent=43 // pred_fallthru
          _
      $region44: #{tpu_custom_call.1} parent=5 // pred_fallthru
        _
    $region6: #{tpu_custom_call.1} parent=1 // loop_footer
      %s17 = sadd.s32 1, %s13
    $region7: #{tpu_custom_call.1} parent=1 // loop_footer_branch
      %12 = sbr.rel target = $region3
    $region8: #{tpu_custom_call.1} parent=1 // loop_exit
      _
    %680 = vsyncpa [#allocation3], 1
    %s681 = scalar_lea.sflag [#allocation3], 1
    %682 = vsyncpa %s681, 1

</llo_original>
